<compile_context>
chip_gen: v5e
topology: v5e:2x2
jax: 0.10.0
libtpu: 0.0.40
codegen_flags: <defaults>
</compile_context>

<pallas_src>
import math

import jax
import jax.numpy as jnp
from jax import lax
from jax.experimental import pallas as pl
from jax.experimental.pallas import tpu as pltpu

BN_EPS = 1e-5
_VMEM_BUDGET = 40 * 1024 * 1024      # conservative: fits v5e/v6e/v7x scoped VMEM


def _round_up(x, m):
    return (x + m - 1) // m * m


def _gelu(v):
    # exact erf-based GELU == torch.nn.GELU() default
    return 0.5 * v * (1.0 + lax.erf(v * (1.0 / math.sqrt(2.0))))


def _mlp_decoder_kernel(x_ref,
                        w1_ref, b1_ref, w2_ref, b2_ref, w3_ref, b3_ref,
                        w4_ref, b4_ref, w5_ref, b5_ref,
                        o_ref):
    wdt = w1_ref.dtype
    h = _gelu(jnp.dot(x_ref[...], w1_ref[...],
                      preferred_element_type=jnp.float32) + b1_ref[...])
    h = _gelu(jnp.dot(h.astype(wdt), w2_ref[...],
                      preferred_element_type=jnp.float32) + b2_ref[...])
    h = _gelu(jnp.dot(h.astype(wdt), w3_ref[...],
                      preferred_element_type=jnp.float32) + b3_ref[...])
    h = _gelu(jnp.dot(h.astype(wdt), w4_ref[...],
                      preferred_element_type=jnp.float32) + b4_ref[...])
    out = jnp.dot(h.astype(wdt), w5_ref[...],
                  preferred_element_type=jnp.float32) + b5_ref[...]
    # Dropout layers are identity in eval mode; BN was folded into W2/W3/W4 in the wrapper.
    # TODO(synk): training-mode dropout / batch-statistics BN intentionally not emulated.
    o_ref[...] = out.astype(o_ref.dtype)


def _fold_bn_into_next(w_next, b_next, gamma, beta, mean, var):
    """Fold eval-mode BatchNorm (applied before w_next) into w_next / b_next."""
    s = gamma * lax.rsqrt(var + BN_EPS)          # (d,)
    t = beta - mean * s                          # (d,)
    return w_next * s[:, None], b_next + t @ w_next


def mlp_decoder(x, params, *, tile_b=None, compute_dtype=jnp.float32):
    """Eval-mode MLPDecoder forward. x: (B, d_in) f32 -> (B, d_out) f32."""
    B, d_in = x.shape
    dh = params["w4"].shape[0]                   # d_in // 2
    d_out = params["w5"].shape[1]

    # ---- one-time wrapper-side BN folding into the following Linear ----
    w1, b1 = params["w1"], params["b1"]
    w2, b2 = _fold_bn_into_next(params["w2"], params["b2"], params["gamma1"],
                                params["beta1"], params["mean1"], params["var1"])
    w3, b3 = _fold_bn_into_next(params["w3"], params["b3"], params["gamma2"],
                                params["beta2"], params["mean2"], params["var2"])
    w4, b4 = _fold_bn_into_next(params["w4"], params["b4"], params["gamma3"],
                                params["beta3"], params["mean3"], params["var3"])
    w5, b5 = params["w5"], params["b5"]

    wdt = jnp.dtype(compute_dtype)
    weights = [w.astype(wdt) for w in (w1, w2, w3, w4, w5)]
    biases = [b.reshape(1, -1).astype(jnp.float32) for b in (b1, b2, b3, b4, b5)]
    x_c = x.astype(wdt)

    wbytes = sum(w.size * w.dtype.itemsize for w in weights)
    bbytes = sum(b.size * b.dtype.itemsize for b in biases)
    # TODO(synk): if the (single-buffered) weights alone exceed the VMEM budget
    # (d_in >~ 3k in f32), add a second grid axis tiling W3/W4/W5 / output columns (v7x 64 MiB).
    assert wbytes + bbytes < _VMEM_BUDGET, "weights too large for weight-resident kernel"

    def io_bytes(tb):
        io = 2 * tb * (d_in * wdt.itemsize + d_out * 4)   # double-buffered x / out tiles
        interm = 2 * tb * d_in * 4                        # live f32 intermediates
        return io + interm

    # ---- batch tile: largest that fits the VMEM budget; >=2 grid steps when possible ----
    if tile_b is None:
        b8 = _round_up(max(B, 8), 8)
        tile_b = min(512, b8)
        if b8 // tile_b < 2 and b8 >= 16:        # give v7x's second TensorCore work
            tile_b = _round_up(b8 // 2, 8)
        while tile_b > 8 and wbytes + bbytes + io_bytes(tile_b) > _VMEM_BUDGET:
            tile_b = _round_up(tile_b // 2, 8)
    assert tile_b > 0 and tile_b % 8 == 0

    b_pad = _round_up(B, tile_b)
    if b_pad != B:                               # pad ragged batch; slice back afterwards
        x_c = jnp.pad(x_c, ((0, b_pad - B), (0, 0)))
    grid = (b_pad // tile_b,)

    vmem_need = wbytes + bbytes + io_bytes(tile_b)
    vmem_limit = int(min(max(2 * vmem_need, 32 * 1024 * 1024), 56 * 1024 * 1024))

    flops = 2 * b_pad * (d_in * d_in + d_in * d_in + d_in * dh + dh * dh + dh * d_out)
    transcendentals = b_pad * (2 * d_in + 2 * dh)
    bytes_accessed = (x_c.size * x_c.dtype.itemsize + wbytes + bbytes + b_pad * d_out * 4)

    def resident(shape):
        # grid-invariant block: fetched once, single VMEM buffer
        return pl.BlockSpec(shape, lambda i: (0, 0), pipeline_mode=pl.Buffered(1))

    in_specs = [pl.BlockSpec((tile_b, d_in), lambda i: (i, 0))]
    for w, b in zip(weights, biases):
        in_specs.append(resident(w.shape))
        in_specs.append(resident(b.shape))

    out = pl.pallas_call(
        _mlp_decoder_kernel,
        out_shape=jax.ShapeDtypeStruct((b_pad, d_out), jnp.float32),
        grid_spec=pltpu.PrefetchScalarGridSpec(
            num_scalar_prefetch=0,
            grid=grid,
            in_specs=in_specs,
            out_specs=pl.BlockSpec((tile_b, d_out), lambda i: (i, 0)),
        ),
        compiler_params=pltpu.CompilerParams(
            dimension_semantics=("parallel",),
            vmem_limit_bytes=vmem_limit,
        ),
        cost_estimate=pl.CostEstimate(
            flops=int(flops),
            transcendentals=int(transcendentals),
            bytes_accessed=int(bytes_accessed),
        ),
    )(x_c,
      weights[0], biases[0], weights[1], biases[1], weights[2], biases[2],
      weights[3], biases[3], weights[4], biases[4])

    return out[:B]


def init_params(key, d_in, d_out):
    """Deterministic synthetic parameters mirroring the module's shapes (weights transposed)."""
    dh = d_in // 2
    ks = jax.random.split(key, 22)

    def linear(kw, kb, fan_in, fan_out):
        s = 1.0 / math.sqrt(fan_in)
        return (jax.random.uniform(kw, (fan_in, fan_out), jnp.float32, -s, s),
                jax.random.uniform(kb, (fan_out,), jnp.float32, -s, s))

    def bnorm(kg, kb, km, kv, d):
        return dict(
            gamma=jax.random.uniform(kg, (d,), jnp.float32, 0.8, 1.2),
            beta=jax.random.normal(kb, (d,), jnp.float32) * 0.1,
            mean=jax.random.normal(km, (d,), jnp.float32) * 0.1,
            var=jax.random.uniform(kv, (d,), jnp.float32, 0.5, 1.5),
        )

    w1, b1 = linear(ks[0], ks[1], d_in, d_in)
    w2, b2 = linear(ks[2], ks[3], d_in, d_in)
    w3, b3 = linear(ks[4], ks[5], d_in, dh)
    w4, b4 = linear(ks[6], ks[7], dh, dh)
    w5, b5 = linear(ks[8], ks[9], dh, d_out)

    p = dict(w1=w1, b1=b1, w2=w2, b2=b2, w3=w3, b3=b3, w4=w4, b4=b4, w5=w5, b5=b5)
    for i, bn in enumerate((bnorm(ks[10], ks[11], ks[12], ks[13], d_in),
                            bnorm(ks[14], ks[15], ks[16], ks[17], d_in),
                            bnorm(ks[18], ks[19], ks[20], ks[21], dh)), start=1):
        for name, v in bn.items():
            p[f"{name}{i}"] = v
    return p


def _reference(x, p):
    """Plain-JAX reference of the same eval-mode forward (unfolded BN)."""
    def bn(h, i):
        return ((h - p[f"mean{i}"]) * lax.rsqrt(p[f"var{i}"] + BN_EPS)
                * p[f"gamma{i}"] + p[f"beta{i}"])
    h = bn(_gelu(x @ p["w1"] + p["b1"]), 1)
    h = bn(_gelu(h @ p["w2"] + p["b2"]), 2)
    h = bn(_gelu(h @ p["w3"] + p["b3"]), 3)
    h = _gelu(h @ p["w4"] + p["b4"])
    return h @ p["w5"] + p["b5"]


if __name__ == "__main__":
    B, D_IN, D_OUT = 24, 128, 32     # small demo; ragged B exercises padding + 2 grid steps

    key = jax.random.PRNGKey(0)
    kx, kp = jax.random.split(key)
    x = jax.random.normal(kx, (B, D_IN), jnp.float32)
    params = init_params(kp, D_IN, D_OUT)

    out = mlp_decoder(x, params)
    out = jax.block_until_ready(out)

    ref = _reference(x, params)
    assert out.shape == (B, D_OUT)
    assert jnp.allclose(out, ref, atol=2e-4, rtol=2e-4), "mismatch vs reference"

    print("KERNEL_OK")
</pallas_src>

<mosaic_0001>
module attributes {stable_mosaic.version = 11 : i64} {
  func.func @_mlp_decoder_kernel(%arg0: i32, %arg1: memref<16x128xf32, #tpu.memory_space<vmem>>, %arg2: memref<128x128xf32, #tpu.memory_space<vmem>>, %arg3: memref<1x128xf32, #tpu.memory_space<vmem>>, %arg4: memref<128x128xf32, #tpu.memory_space<vmem>>, %arg5: memref<1x128xf32, #tpu.memory_space<vmem>>, %arg6: memref<128x64xf32, #tpu.memory_space<vmem>>, %arg7: memref<1x64xf32, #tpu.memory_space<vmem>>, %arg8: memref<64x64xf32, #tpu.memory_space<vmem>>, %arg9: memref<1x64xf32, #tpu.memory_space<vmem>>, %arg10: memref<64x32xf32, #tpu.memory_space<vmem>>, %arg11: memref<1x32xf32, #tpu.memory_space<vmem>>, %arg12: memref<16x32xf32, #tpu.memory_space<vmem>>) attributes {dimension_semantics = [#tpu.dimension_semantics<parallel>], iteration_bounds = array<i64: 2>, scalar_prefetch = 0 : i64, scratch_operands = 0 : i64, tpu.core_type = #tpu.core_type<tc>, window_params = [{transform_indices = @transform_0, window_bounds = array<i64: 16, 128>}, {pipeline_mode = #tpu.pipeline_mode<synchronous>, transform_indices = @transform_1, window_bounds = array<i64: 128, 128>}, {pipeline_mode = #tpu.pipeline_mode<synchronous>, transform_indices = @transform_2, window_bounds = array<i64: 1, 128>}, {pipeline_mode = #tpu.pipeline_mode<synchronous>, transform_indices = @transform_3, window_bounds = array<i64: 128, 128>}, {pipeline_mode = #tpu.pipeline_mode<synchronous>, transform_indices = @transform_4, window_bounds = array<i64: 1, 128>}, {pipeline_mode = #tpu.pipeline_mode<synchronous>, transform_indices = @transform_5, window_bounds = array<i64: 128, 64>}, {pipeline_mode = #tpu.pipeline_mode<synchronous>, transform_indices = @transform_6, window_bounds = array<i64: 1, 64>}, {pipeline_mode = #tpu.pipeline_mode<synchronous>, transform_indices = @transform_7, window_bounds = array<i64: 64, 64>}, {pipeline_mode = #tpu.pipeline_mode<synchronous>, transform_indices = @transform_8, window_bounds = array<i64: 1, 64>}, {pipeline_mode = #tpu.pipeline_mode<synchronous>, transform_indices = @transform_9, window_bounds = array<i64: 64, 32>}, {pipeline_mode = #tpu.pipeline_mode<synchronous>, transform_indices = @transform_10, window_bounds = array<i64: 1, 32>}, {transform_indices = @transform_11, window_bounds = array<i64: 16, 32>}]} {
    %c0 = arith.constant 0 : index
    %c0_0 = arith.constant 0 : index
    %0 = vector.load %arg1[%c0, %c0_0] : memref<16x128xf32, #tpu.memory_space<vmem>>, vector<16x128xf32>
    %c0_1 = arith.constant 0 : index
    %c0_2 = arith.constant 0 : index
    %1 = vector.load %arg2[%c0_1, %c0_2] : memref<128x128xf32, #tpu.memory_space<vmem>>, vector<128x128xf32>
    %cst = arith.constant dense<0.000000e+00> : vector<16x128xf32>
    %2 = tpu.matmul %0, %1, %cst {dimension_numbers = #tpu.dot_dimension_numbers<[1], [0], [0], [1], [0, 0, 1, 1], [], []>} : vector<16x128xf32>, vector<128x128xf32>, vector<16x128xf32> -> vector<16x128xf32>
    %c0_3 = arith.constant 0 : index
    %c0_4 = arith.constant 0 : index
    %3 = vector.load %arg3[%c0_3, %c0_4] : memref<1x128xf32, #tpu.memory_space<vmem>>, vector<1x128xf32>
    %4 = vector.broadcast %3 : vector<1x128xf32> to vector<16x128xf32>
    %5 = arith.addf %2, %4 : vector<16x128xf32>
    %cst_5 = arith.constant 5.000000e-01 : f32
    %6 = vector.broadcast %cst_5 : f32 to vector<16x128xf32>
    %7 = arith.mulf %6, %5 : vector<16x128xf32>
    %cst_6 = arith.constant 0.707106769 : f32
    %8 = vector.broadcast %cst_6 : f32 to vector<16x128xf32>
    %9 = arith.mulf %5, %8 : vector<16x128xf32>
    %10 = math.erf %9 : vector<16x128xf32>
    %cst_7 = arith.constant 1.000000e+00 : f32
    %11 = vector.broadcast %cst_7 : f32 to vector<16x128xf32>
    %12 = arith.addf %11, %10 : vector<16x128xf32>
    %13 = arith.mulf %7, %12 : vector<16x128xf32>
    %c0_8 = arith.constant 0 : index
    %c0_9 = arith.constant 0 : index
    %14 = vector.load %arg4[%c0_8, %c0_9] : memref<128x128xf32, #tpu.memory_space<vmem>>, vector<128x128xf32>
    %cst_10 = arith.constant dense<0.000000e+00> : vector<16x128xf32>
    %15 = tpu.matmul %13, %14, %cst_10 {dimension_numbers = #tpu.dot_dimension_numbers<[1], [0], [0], [1], [0, 0, 1, 1], [], []>} : vector<16x128xf32>, vector<128x128xf32>, vector<16x128xf32> -> vector<16x128xf32>
    %c0_11 = arith.constant 0 : index
    %c0_12 = arith.constant 0 : index
    %16 = vector.load %arg5[%c0_11, %c0_12] : memref<1x128xf32, #tpu.memory_space<vmem>>, vector<1x128xf32>
    %17 = vector.broadcast %16 : vector<1x128xf32> to vector<16x128xf32>
    %18 = arith.addf %15, %17 : vector<16x128xf32>
    %cst_13 = arith.constant 5.000000e-01 : f32
    %19 = vector.broadcast %cst_13 : f32 to vector<16x128xf32>
    %20 = arith.mulf %19, %18 : vector<16x128xf32>
    %cst_14 = arith.constant 0.707106769 : f32
    %21 = vector.broadcast %cst_14 : f32 to vector<16x128xf32>
    %22 = arith.mulf %18, %21 : vector<16x128xf32>
    %23 = math.erf %22 : vector<16x128xf32>
    %cst_15 = arith.constant 1.000000e+00 : f32
    %24 = vector.broadcast %cst_15 : f32 to vector<16x128xf32>
    %25 = arith.addf %24, %23 : vector<16x128xf32>
    %26 = arith.mulf %20, %25 : vector<16x128xf32>
    %c0_16 = arith.constant 0 : index
    %c0_17 = arith.constant 0 : index
    %27 = vector.load %arg6[%c0_16, %c0_17] : memref<128x64xf32, #tpu.memory_space<vmem>>, vector<128x64xf32>
    %cst_18 = arith.constant dense<0.000000e+00> : vector<16x64xf32>
    %28 = tpu.matmul %26, %27, %cst_18 {dimension_numbers = #tpu.dot_dimension_numbers<[1], [0], [0], [1], [0, 0, 1, 1], [], []>} : vector<16x128xf32>, vector<128x64xf32>, vector<16x64xf32> -> vector<16x64xf32>
    %c0_19 = arith.constant 0 : index
    %c0_20 = arith.constant 0 : index
    %29 = vector.load %arg7[%c0_19, %c0_20] : memref<1x64xf32, #tpu.memory_space<vmem>>, vector<1x64xf32>
    %30 = vector.broadcast %29 : vector<1x64xf32> to vector<16x64xf32>
    %31 = arith.addf %28, %30 : vector<16x64xf32>
    %cst_21 = arith.constant 5.000000e-01 : f32
    %32 = vector.broadcast %cst_21 : f32 to vector<16x64xf32>
    %33 = arith.mulf %32, %31 : vector<16x64xf32>
    %cst_22 = arith.constant 0.707106769 : f32
    %34 = vector.broadcast %cst_22 : f32 to vector<16x64xf32>
    %35 = arith.mulf %31, %34 : vector<16x64xf32>
    %36 = math.erf %35 : vector<16x64xf32>
    %cst_23 = arith.constant 1.000000e+00 : f32
    %37 = vector.broadcast %cst_23 : f32 to vector<16x64xf32>
    %38 = arith.addf %37, %36 : vector<16x64xf32>
    %39 = arith.mulf %33, %38 : vector<16x64xf32>
    %c0_24 = arith.constant 0 : index
    %c0_25 = arith.constant 0 : index
    %40 = vector.load %arg8[%c0_24, %c0_25] : memref<64x64xf32, #tpu.memory_space<vmem>>, vector<64x64xf32>
    %cst_26 = arith.constant dense<0.000000e+00> : vector<16x64xf32>
    %41 = tpu.matmul %39, %40, %cst_26 {dimension_numbers = #tpu.dot_dimension_numbers<[1], [0], [0], [1], [0, 0, 1, 1], [], []>} : vector<16x64xf32>, vector<64x64xf32>, vector<16x64xf32> -> vector<16x64xf32>
    %c0_27 = arith.constant 0 : index
    %c0_28 = arith.constant 0 : index
    %42 = vector.load %arg9[%c0_27, %c0_28] : memref<1x64xf32, #tpu.memory_space<vmem>>, vector<1x64xf32>
    %43 = vector.broadcast %42 : vector<1x64xf32> to vector<16x64xf32>
    %44 = arith.addf %41, %43 : vector<16x64xf32>
    %cst_29 = arith.constant 5.000000e-01 : f32
    %45 = vector.broadcast %cst_29 : f32 to vector<16x64xf32>
    %46 = arith.mulf %45, %44 : vector<16x64xf32>
    %cst_30 = arith.constant 0.707106769 : f32
    %47 = vector.broadcast %cst_30 : f32 to vector<16x64xf32>
    %48 = arith.mulf %44, %47 : vector<16x64xf32>
    %49 = math.erf %48 : vector<16x64xf32>
    %cst_31 = arith.constant 1.000000e+00 : f32
    %50 = vector.broadcast %cst_31 : f32 to vector<16x64xf32>
    %51 = arith.addf %50, %49 : vector<16x64xf32>
    %52 = arith.mulf %46, %51 : vector<16x64xf32>
    %c0_32 = arith.constant 0 : index
    %c0_33 = arith.constant 0 : index
    %53 = vector.load %arg10[%c0_32, %c0_33] : memref<64x32xf32, #tpu.memory_space<vmem>>, vector<64x32xf32>
    %cst_34 = arith.constant dense<0.000000e+00> : vector<16x32xf32>
    %54 = tpu.matmul %52, %53, %cst_34 {dimension_numbers = #tpu.dot_dimension_numbers<[1], [0], [0], [1], [0, 0, 1, 1], [], []>} : vector<16x64xf32>, vector<64x32xf32>, vector<16x32xf32> -> vector<16x32xf32>
    %c0_35 = arith.constant 0 : index
    %c0_36 = arith.constant 0 : index
    %55 = vector.load %arg11[%c0_35, %c0_36] : memref<1x32xf32, #tpu.memory_space<vmem>>, vector<1x32xf32>
    %56 = vector.broadcast %55 : vector<1x32xf32> to vector<16x32xf32>
    %57 = arith.addf %54, %56 : vector<16x32xf32>
    %c0_37 = arith.constant 0 : index
    %c0_38 = arith.constant 0 : index
    %58 = vector.load %arg12[%c0_37, %c0_38] : memref<16x32xf32, #tpu.memory_space<vmem>>, vector<16x32xf32>
    tpu.vector_store %arg12[%c0_37, %c0_38], %57 {strides = array<i32>} : memref<16x32xf32, #tpu.memory_space<vmem>>, vector<16x32xf32>,
    return
  }
  func.func @transform_0(%arg0: i32) -> (i32, i32) {
    %c0_i32 = arith.constant 0 : i32
    %c0_i32_0 = arith.constant 0 : i32
    return %arg0, %c0_i32 : i32, i32
  }
  func.func @transform_1(%arg0: i32) -> (i32, i32) {
    %c0_i32 = arith.constant 0 : i32
    %c0_i32_0 = arith.constant 0 : i32
    %c0_i32_1 = arith.constant 0 : i32
    return %c0_i32, %c0_i32_0 : i32, i32
  }
  func.func @transform_2(%arg0: i32) -> (i32, i32) {
    %c0_i32 = arith.constant 0 : i32
    %c0_i32_0 = arith.constant 0 : i32
    %c0_i32_1 = arith.constant 0 : i32
    return %c0_i32, %c0_i32_0 : i32, i32
  }
  func.func @transform_3(%arg0: i32) -> (i32, i32) {
    %c0_i32 = arith.constant 0 : i32
    %c0_i32_0 = arith.constant 0 : i32
    %c0_i32_1 = arith.constant 0 : i32
    return %c0_i32, %c0_i32_0 : i32, i32
  }
  func.func @transform_4(%arg0: i32) -> (i32, i32) {
    %c0_i32 = arith.constant 0 : i32
    %c0_i32_0 = arith.constant 0 : i32
    %c0_i32_1 = arith.constant 0 : i32
    return %c0_i32, %c0_i32_0 : i32, i32
  }
  func.func @transform_5(%arg0: i32) -> (i32, i32) {
    %c0_i32 = arith.constant 0 : i32
    %c0_i32_0 = arith.constant 0 : i32
    %c0_i32_1 = arith.constant 0 : i32
    return %c0_i32, %c0_i32_0 : i32, i32
  }
  func.func @transform_6(%arg0: i32) -> (i32, i32) {
    %c0_i32 = arith.constant 0 : i32
    %c0_i32_0 = arith.constant 0 : i32
    %c0_i32_1 = arith.constant 0 : i32
    return %c0_i32, %c0_i32_0 : i32, i32
  }
  func.func @transform_7(%arg0: i32) -> (i32, i32) {
    %c0_i32 = arith.constant 0 : i32
    %c0_i32_0 = arith.constant 0 : i32
    %c0_i32_1 = arith.constant 0 : i32
    return %c0_i32, %c0_i32_0 : i32, i32
  }
  func.func @transform_8(%arg0: i32) -> (i32, i32) {
    %c0_i32 = arith.constant 0 : i32
    %c0_i32_0 = arith.constant 0 : i32
    %c0_i32_1 = arith.constant 0 : i32
    return %c0_i32, %c0_i32_0 : i32, i32
  }
  func.func @transform_9(%arg0: i32) -> (i32, i32) {
    %c0_i32 = arith.constant 0 : i32
    %c0_i32_0 = arith.constant 0 : i32
    %c0_i32_1 = arith.constant 0 : i32
    return %c0_i32, %c0_i32_0 : i32, i32
  }
  func.func @transform_10(%arg0: i32) -> (i32, i32) {
    %c0_i32 = arith.constant 0 : i32
    %c0_i32_0 = arith.constant 0 : i32
    %c0_i32_1 = arith.constant 0 : i32
    return %c0_i32, %c0_i32_0 : i32, i32
  }
  func.func @transform_11(%arg0: i32) -> (i32, i32) {
    %c0_i32 = arith.constant 0 : i32
    %c0_i32_0 = arith.constant 0 : i32
    return %arg0, %c0_i32 : i32, i32
  }
}

</mosaic_0001>

<llo_original>
// kernel: tpu_custom_call.1
$region0: #{tpu_custom_call.1}
  #allocation0 [shape = 'u32[]', space=smem, size = 0x4, offset = 0x4, fixed_abs, tag = 'smem constant byte address 0x4 - core index']
  #allocation1 [shape = 'u32[72,128]{1,0:T(1,128)}', space=vmem, size = 0x9000, scoped, tag = 'internal scratch']
  %s0 = inlined_call_operand.vmem [shape: f32[32,128], index: 0, kind: input, shape index: {}]
  %s1 = inlined_call_operand.vmem [shape: f32[128,128], index: 1, kind: input, shape index: {}]
  %s2 = inlined_call_operand.hbm [shape: f32[1,128], index: 2, kind: input, shape index: {}]
  %s3 = inlined_call_operand.vmem [shape: f32[128,128], index: 3, kind: input, shape index: {}]
  %s4 = inlined_call_operand.vmem [shape: f32[1,128], index: 4, kind: input, shape index: {}]
  %s5 = inlined_call_operand.vmem [shape: f32[128,64], index: 5, kind: input, shape index: {}]
  %s6 = inlined_call_operand.vmem [shape: f32[1,64], index: 6, kind: input, shape index: {}]
  %s7 = inlined_call_operand.hbm [shape: f32[64,64], index: 7, kind: input, shape index: {}]
  %s8 = inlined_call_operand.vmem [shape: f32[1,64], index: 8, kind: input, shape index: {}]
  %s9 = inlined_call_operand.vmem [shape: f32[64,32], index: 9, kind: input, shape index: {}]
  %s10 = inlined_call_operand.vmem [shape: f32[1,32], index: 10, kind: input, shape index: {}]
  %s11 = inlined_call_operand.hbm [shape: f32[32,32], index: 11, kind: output, shape index: {}]
  %s12 = sld [smem:[#allocation0]]
  $region85: #{tpu_custom_call.1} parent=0
    _
  %s14 = ssub.s32 1, %s12
  %s15 = scalar_select 0, %s14, %s12
  $region1: #{tpu_custom_call.1} parent=0
    #allocation2 [shape = 'u8[512]{0}', space=vmem, size = 0x400, scoped, tag = 'input window, operand 2, single buffered']
    #allocation3 [shape = 's32[2]{0}', space=sflag, size = 0x8, scoped, tag = 'scoped memory for tpu_custom_call.1']
    #allocation4 [shape = 's32[2]{0}', space=sflag, size = 0x8, scoped, tag = 'scoped memory for tpu_custom_call.1']
    #allocation5 [shape = 'u8[32768]{0}', space=vmem, size = 0x8000, scoped, tag = 'input window, operand 7, single buffered']
    #allocation6 [shape = 's32[1]{0}', space=sflag, size = 0x4, scoped, tag = 'scoped memory for tpu_custom_call.1']
    #allocation7 [shape = 'u8[16384]{0}', space=vmem, size = 0x4000, scoped, tag = 'output window, operand 0']
    %16 = vsyncpa [#allocation3], 0
    %17 = vsyncpa [#allocation6], 0
    %18 = vsyncpa [#allocation4], 0
    %s19 = scalar_lea.sflag [#allocation4], 1
    %20 = vsyncpa %s19, 0
    loop: start=0, step=1, limit=4
    $region2: #{tpu_custom_call.1} parent=1 // loop_pre_header
      _
    $region3: #{tpu_custom_call.1} parent=1 // loop_header
      %s22 = sphi 0, %s26
      %p23 = scmp.ge.s32.totalorder %s22, 4
      %s32 = sphi 0, %s34
      %s35 = sphi 0, %s32
      %s36 = sphi 0, %s35
      %s52 = sphi 0, %s36
      %s56 = sphi 0, %s56
      %s58 = sphi 0, %s56
      %s59 = sphi 0, %s58
      %s73 = sphi 0, %s59
      %s77 = sphi 0, %s77
      %s79 = sphi 0, %s77
      %s80 = sphi 0, %s79
      %s94 = sphi 0, %s80
      %s98 = sphi 0, %s98
      %s100 = sphi 0, %s98
      %s101 = sphi 0, %s100
      %s115 = sphi 0, %s101
      %s119 = sphi 0, %s119
      %s121 = sphi 0, %s119
      %s122 = sphi 0, %s121
      %s136 = sphi 0, %s122
      %s140 = sphi 0, %s140
      %s142 = sphi 0, %s140
      %s143 = sphi 0, %s142
      %s157 = sphi 0, %s143
      %s161 = sphi 0, %s161
      %s163 = sphi 0, %s161
      %s164 = sphi 0, %s163
      %s178 = sphi 0, %s164
      %s182 = sphi 0, %s182
      %s184 = sphi 0, %s182
      %s185 = sphi 0, %s184
      %s199 = sphi 0, %s185
      %s203 = sphi 0, %s203
      %s205 = sphi 0, %s203
      %s206 = sphi 0, %s205
      %s220 = sphi 0, %s206
      %s224 = sphi 0, %s224
      %s226 = sphi 0, %s224
      %s227 = sphi 0, %s226
      %s241 = sphi 0, %s227
      %s245 = sphi 0, %s245
      %s247 = sphi 0, %s245
      %s248 = sphi 0, %s247
      %s262 = sphi 0, %s248
      %s268 = sphi 0, %s270
      %s271 = sphi 0, %s268
      %s272 = sphi 0, %s271
      %s288 = sphi 0, %s272
    $region4: #{tpu_custom_call.1} parent=1 // loop_header_branch
      %25 = sbr.rel (%p23) target = $region8
    $region5: #{tpu_custom_call.1} parent=1 // loop_body
      %s27 = ssub.s32 %s22, 1
      %s28 = ssub.s32 %s22, 2
      %s29 = sadd.s32 %s22, 1
      %s30 = ssub.s32 %s22, %s29
      %p31 = scmp.eq.s32.totalorder %s30, 0
      %s33 = sadd.s32 %s32, 1
      %s34 = scalar_select %p31, %s32, %s33
      %p37 = pneg %p31
      %p38 = scmp.eq.s32.totalorder %s22, 1
      %p39 = por %p37, %p38
      %p40 = scmp.ne.s32.totalorder %s32, %s35
      %p41 = scmp.eq.s32.totalorder %s22, 0
      %p42 = por %p40, %p41
      %p43 = scmp.ne.s32.totalorder %s32, %s35
      %p44 = scmp.eq.s32.totalorder %s27, 1
      %p45 = por %p43, %p44
      %p46 = scmp.ne.s32.totalorder %s35, %s36
      %p47 = scmp.eq.s32.totalorder %s27, 0
      %p48 = por %p46, %p47
      %p49 = scmp.ne.s32.totalorder %s35, %s36
      %p50 = scmp.eq.s32.totalorder %s28, 1
      %p51 = por %p49, %p50
      %p53 = scmp.ne.s32.totalorder %s36, %s52
      %p54 = scmp.eq.s32.totalorder %s28, 0
      %p55 = por %p53, %p54
      %s57 = sadd.s32 %s56, 1
      %p60 = scmp.eq.s32.totalorder %s22, 1
      %p61 = scmp.ne.s32.totalorder %s56, %s58
      %p62 = scmp.eq.s32.totalorder %s22, 0
      %p63 = por %p61, %p62
      %p64 = scmp.ne.s32.totalorder %s56, %s58
      %p65 = scmp.eq.s32.totalorder %s27, 1
      %p66 = por %p64, %p65
      %p67 = scmp.ne.s32.totalorder %s58, %s59
      %p68 = scmp.eq.s32.totalorder %s27, 0
      %p69 = por %p67, %p68
      %p70 = scmp.ne.s32.totalorder %s58, %s59
      %p71 = scmp.eq.s32.totalorder %s28, 1
      %p72 = por %p70, %p71
      %p74 = scmp.ne.s32.totalorder %s59, %s73
      %p75 = scmp.eq.s32.totalorder %s28, 0
      %p76 = por %p74, %p75
      %s78 = sadd.s32 %s77, 1
      %p81 = scmp.eq.s32.totalorder %s22, 1
      %p82 = scmp.ne.s32.totalorder %s77, %s79
      %p83 = scmp.eq.s32.totalorder %s22, 0
      %p84 = por %p82, %p83
      %p85 = scmp.ne.s32.totalorder %s77, %s79
      %p86 = scmp.eq.s32.totalorder %s27, 1
      %p87 = por %p85, %p86
      %p88 = scmp.ne.s32.totalorder %s79, %s80
      %p89 = scmp.eq.s32.totalorder %s27, 0
      %p90 = por %p88, %p89
      %p91 = scmp.ne.s32.totalorder %s79, %s80
      %p92 = scmp.eq.s32.totalorder %s28, 1
      %p93 = por %p91, %p92
      %p95 = scmp.ne.s32.totalorder %s80, %s94
      %p96 = scmp.eq.s32.totalorder %s28, 0
      %p97 = por %p95, %p96
      %s99 = sadd.s32 %s98, 1
      %p102 = scmp.eq.s32.totalorder %s22, 1
      %p103 = scmp.ne.s32.totalorder %s98, %s100
      %p104 = scmp.eq.s32.totalorder %s22, 0
      %p105 = por %p103, %p104
      %p106 = scmp.ne.s32.totalorder %s98, %s100
      %p107 = scmp.eq.s32.totalorder %s27, 1
      %p108 = por %p106, %p107
      %p109 = scmp.ne.s32.totalorder %s100, %s101
      %p110 = scmp.eq.s32.totalorder %s27, 0
      %p111 = por %p109, %p110
      %p112 = scmp.ne.s32.totalorder %s100, %s101
      %p113 = scmp.eq.s32.totalorder %s28, 1
      %p114 = por %p112, %p113
      %p116 = scmp.ne.s32.totalorder %s101, %s115
      %p117 = scmp.eq.s32.totalorder %s28, 0
      %p118 = por %p116, %p117
      %s120 = sadd.s32 %s119, 1
      %p123 = scmp.eq.s32.totalorder %s22, 1
      %p124 = scmp.ne.s32.totalorder %s119, %s121
      %p125 = scmp.eq.s32.totalorder %s22, 0
      %p126 = por %p124, %p125
      %p127 = scmp.ne.s32.totalorder %s119, %s121
      %p128 = scmp.eq.s32.totalorder %s27, 1
      %p129 = por %p127, %p128
      %p130 = scmp.ne.s32.totalorder %s121, %s122
      %p131 = scmp.eq.s32.totalorder %s27, 0
      %p132 = por %p130, %p131
      %p133 = scmp.ne.s32.totalorder %s121, %s122
      %p134 = scmp.eq.s32.totalorder %s28, 1
      %p135 = por %p133, %p134
      %p137 = scmp.ne.s32.totalorder %s122, %s136
      %p138 = scmp.eq.s32.totalorder %s28, 0
      %p139 = por %p137, %p138
      %s141 = sadd.s32 %s140, 1
      %p144 = scmp.eq.s32.totalorder %s22, 1
      %p145 = scmp.ne.s32.totalorder %s140, %s142
      %p146 = scmp.eq.s32.totalorder %s22, 0
      %p147 = por %p145, %p146
      %p148 = scmp.ne.s32.totalorder %s140, %s142
      %p149 = scmp.eq.s32.totalorder %s27, 1
      %p150 = por %p148, %p149
      %p151 = scmp.ne.s32.totalorder %s142, %s143
      %p152 = scmp.eq.s32.totalorder %s27, 0
      %p153 = por %p151, %p152
      %p154 = scmp.ne.s32.totalorder %s142, %s143
      %p155 = scmp.eq.s32.totalorder %s28, 1
      %p156 = por %p154, %p155
      %p158 = scmp.ne.s32.totalorder %s143, %s157
      %p159 = scmp.eq.s32.totalorder %s28, 0
      %p160 = por %p158, %p159
      %s162 = sadd.s32 %s161, 1
      %p165 = scmp.eq.s32.totalorder %s22, 1
      %p166 = scmp.ne.s32.totalorder %s161, %s163
      %p167 = scmp.eq.s32.totalorder %s22, 0
      %p168 = por %p166, %p167
      %p169 = scmp.ne.s32.totalorder %s161, %s163
      %p170 = scmp.eq.s32.totalorder %s27, 1
      %p171 = por %p169, %p170
      %p172 = scmp.ne.s32.totalorder %s163, %s164
      %p173 = scmp.eq.s32.totalorder %s27, 0
      %p174 = por %p172, %p173
      %p175 = scmp.ne.s32.totalorder %s163, %s164
      %p176 = scmp.eq.s32.totalorder %s28, 1
      %p177 = por %p175, %p176
      %p179 = scmp.ne.s32.totalorder %s164, %s178
      %p180 = scmp.eq.s32.totalorder %s28, 0
      %p181 = por %p179, %p180
      %s183 = sadd.s32 %s182, 1
      %p186 = scmp.eq.s32.totalorder %s22, 1
      %p187 = scmp.ne.s32.totalorder %s182, %s184
      %p188 = scmp.eq.s32.totalorder %s22, 0
      %p189 = por %p187, %p188
      %p190 = scmp.ne.s32.totalorder %s182, %s184
      %p191 = scmp.eq.s32.totalorder %s27, 1
      %p192 = por %p190, %p191
      %p193 = scmp.ne.s32.totalorder %s184, %s185
      %p194 = scmp.eq.s32.totalorder %s27, 0
      %p195 = por %p193, %p194
      %p196 = scmp.ne.s32.totalorder %s184, %s185
      %p197 = scmp.eq.s32.totalorder %s28, 1
      %p198 = por %p196, %p197
      %p200 = scmp.ne.s32.totalorder %s185, %s199
      %p201 = scmp.eq.s32.totalorder %s28, 0
      %p202 = por %p200, %p201
      %s204 = sadd.s32 %s203, 1
      %p207 = scmp.eq.s32.totalorder %s22, 1
      %p208 = scmp.ne.s32.totalorder %s203, %s205
      %p209 = scmp.eq.s32.totalorder %s22, 0
      %p210 = por %p208, %p209
      %p211 = scmp.ne.s32.totalorder %s203, %s205
      %p212 = scmp.eq.s32.totalorder %s27, 1
      %p213 = por %p211, %p212
      %p214 = scmp.ne.s32.totalorder %s205, %s206
      %p215 = scmp.eq.s32.totalorder %s27, 0
      %p216 = por %p214, %p215
      %p217 = scmp.ne.s32.totalorder %s205, %s206
      %p218 = scmp.eq.s32.totalorder %s28, 1
      %p219 = por %p217, %p218
      %p221 = scmp.ne.s32.totalorder %s206, %s220
      %p222 = scmp.eq.s32.totalorder %s28, 0
      %p223 = por %p221, %p222
      %s225 = sadd.s32 %s224, 1
      %p228 = scmp.eq.s32.totalorder %s22, 1
      %p229 = scmp.ne.s32.totalorder %s224, %s226
      %p230 = scmp.eq.s32.totalorder %s22, 0
      %p231 = por %p229, %p230
      %p232 = scmp.ne.s32.totalorder %s224, %s226
      %p233 = scmp.eq.s32.totalorder %s27, 1
      %p234 = por %p232, %p233
      %p235 = scmp.ne.s32.totalorder %s226, %s227
      %p236 = scmp.eq.s32.totalorder %s27, 0
      %p237 = por %p235, %p236
      %p238 = scmp.ne.s32.totalorder %s226, %s227
      %p239 = scmp.eq.s32.totalorder %s28, 1
      %p240 = por %p238, %p239
      %p242 = scmp.ne.s32.totalorder %s227, %s241
      %p243 = scmp.eq.s32.totalorder %s28, 0
      %p244 = por %p242, %p243
      %s246 = sadd.s32 %s245, 1
      %p249 = scmp.eq.s32.totalorder %s22, 1
      %p250 = scmp.ne.s32.totalorder %s245, %s247
      %p251 = scmp.eq.s32.totalorder %s22, 0
      %p252 = por %p250, %p251
      %p253 = scmp.ne.s32.totalorder %s245, %s247
      %p254 = scmp.eq.s32.totalorder %s27, 1
      %p255 = por %p253, %p254
      %p256 = scmp.ne.s32.totalorder %s247, %s248
      %p257 = scmp.eq.s32.totalorder %s27, 0
      %p258 = por %p256, %p257
      %p259 = scmp.ne.s32.totalorder %s247, %s248
      %p260 = scmp.eq.s32.totalorder %s28, 1
      %p261 = por %p259, %p260
      %p263 = scmp.ne.s32.totalorder %s248, %s262
      %p264 = scmp.eq.s32.totalorder %s28, 0
      %p265 = por %p263, %p264
      %s266 = ssub.s32 %s22, %s29
      %p267 = scmp.eq.s32.totalorder %s266, 0
      %s269 = sadd.s32 %s268, 1
      %s270 = scalar_select %p267, %s268, %s269
      %p273 = pneg %p267
      %p274 = scmp.eq.s32.totalorder %s22, 1
      %p275 = por %p273, %p274
      %p276 = scmp.ne.s32.totalorder %s268, %s271
      %p277 = scmp.eq.s32.totalorder %s22, 0
      %p278 = por %p276, %p277
      %p279 = scmp.ne.s32.totalorder %s268, %s271
      %p280 = scmp.eq.s32.totalorder %s27, 1
      %p281 = por %p279, %p280
      %p282 = scmp.ne.s32.totalorder %s271, %s272
      %p283 = scmp.eq.s32.totalorder %s27, 0
      %p284 = por %p282, %p283
      %p285 = scmp.ne.s32.totalorder %s271, %s272
      %p286 = scmp.eq.s32.totalorder %s28, 1
      %p287 = por %p285, %p286
      %p289 = scmp.ne.s32.totalorder %s272, %s288
      %p290 = scmp.eq.s32.totalorder %s28, 0
      %p291 = por %p289, %p290
      %p292 = scmp.le.s32.totalorder 1, %s22
      %p293 = scmp.lt.s32.totalorder %s22, 3
      %p294 = pnand %p292, %p293
      %p295 = pneg %p294
      // Predicated region
      $region9: #{tpu_custom_call.1} parent=5 // pred_check
        _
      $region10: #{tpu_custom_call.1} parent=5 // pred_check_branch
        %297 = sbr.rel (%p294) target = $region12
      $region11: #{tpu_custom_call.1} parent=5 // pred_region
        %s298 = ssub.s32 %s22, 1
        // Predicated region
        $region13: #{tpu_custom_call.1} parent=11 // pred_check
          %p299 = pneg %p69
        $region14: #{tpu_custom_call.1} parent=11 // pred_check_branch
          %301 = sbr.rel (%p299) target = $region16
        $region15: #{tpu_custom_call.1} parent=11 // pred_region
          _
        $region16: #{tpu_custom_call.1} parent=11 // pred_fallthru
          _
        // Predicated region
        $region17: #{tpu_custom_call.1} parent=11 // pred_check
          %p302 = pneg %p90
        $region18: #{tpu_custom_call.1} parent=11 // pred_check_branch
          %304 = sbr.rel (%p302) target = $region20
        $region19: #{tpu_custom_call.1} parent=11 // pred_region
          %306 = vsyncadd [#allocation3], 0
          %s308 = sshll.u32 %s2, 4
          %s309 = int_to_ptr.hbm [resolvable:$true] %s308
          %s310 = sshll.u32 [#allocation2], 4
          %s311 = int_to_ptr.vmem [resolvable:$true] %s310
          %313 = dma.hbm_to_vmem [thread:$0]  %s309, 16, %s311, [#allocation3]
        $region20: #{tpu_custom_call.1} parent=11 // pred_fallthru
          _
        // Predicated region
        $region21: #{tpu_custom_call.1} parent=11 // pred_check
          %p314 = pneg %p111
        $region22: #{tpu_custom_call.1} parent=11 // pred_check_branch
          %316 = sbr.rel (%p314) target = $region24
        $region23: #{tpu_custom_call.1} parent=11 // pred_region
          _
        $region24: #{tpu_custom_call.1} parent=11 // pred_fallthru
          _
        // Predicated region
        $region25: #{tpu_custom_call.1} parent=11 // pred_check
          %p317 = pneg %p132
        $region26: #{tpu_custom_call.1} parent=11 // pred_check_branch
          %319 = sbr.rel (%p317) target = $region28
        $region27: #{tpu_custom_call.1} parent=11 // pred_region
          _
        $region28: #{tpu_custom_call.1} parent=11 // pred_fallthru
          _
        // Predicated region
        $region29: #{tpu_custom_call.1} parent=11 // pred_check
          %p320 = pneg %p153
        $region30: #{tpu_custom_call.1} parent=11 // pred_check_branch
          %322 = sbr.rel (%p320) target = $region32
        $region31: #{tpu_custom_call.1} parent=11 // pred_region
          _
        $region32: #{tpu_custom_call.1} parent=11 // pred_fallthru
          _
        // Predicated region
        $region33: #{tpu_custom_call.1} parent=11 // pred_check
          %p323 = pneg %p174
        $region34: #{tpu_custom_call.1} parent=11 // pred_check_branch
          %325 = sbr.rel (%p323) target = $region36
        $region35: #{tpu_custom_call.1} parent=11 // pred_region
          _
        $region36: #{tpu_custom_call.1} parent=11 // pred_fallthru
          _
        // Predicated region
        $region37: #{tpu_custom_call.1} parent=11 // pred_check
          %p326 = pneg %p195
        $region38: #{tpu_custom_call.1} parent=11 // pred_check_branch
          %328 = sbr.rel (%p326) target = $region40
        $region39: #{tpu_custom_call.1} parent=11 // pred_region
          %330 = vsyncadd [#allocation6], 0
          %s331 = sshll.u32 %s7, 4
          %s332 = int_to_ptr.hbm [resolvable:$true] %s331
          %s333 = sshll.u32 [#allocation5], 4
          %s334 = int_to_ptr.vmem [resolvable:$true] %s333
          %339 = dma.hbm_to_vmem [thread:$0]  %s332, 1024, %s334, [#allocation6], 128, 128, 8
        $region40: #{tpu_custom_call.1} parent=11 // pred_fallthru
          _
        // Predicated region
        $region41: #{tpu_custom_call.1} parent=11 // pred_check
          %p340 = pneg %p216
        $region42: #{tpu_custom_call.1} parent=11 // pred_check_branch
          %342 = sbr.rel (%p340) target = $region44
        $region43: #{tpu_custom_call.1} parent=11 // pred_region
          _
        $region44: #{tpu_custom_call.1} parent=11 // pred_fallthru
          _
        // Predicated region
        $region45: #{tpu_custom_call.1} parent=11 // pred_check
          %p343 = pneg %p237
        $region46: #{tpu_custom_call.1} parent=11 // pred_check_branch
          %345 = sbr.rel (%p343) target = $region48
        $region47: #{tpu_custom_call.1} parent=11 // pred_region
          _
        $region48: #{tpu_custom_call.1} parent=11 // pred_fallthru
          _
        // Predicated region
        $region49: #{tpu_custom_call.1} parent=11 // pred_check
          %p346 = pneg %p258
        $region50: #{tpu_custom_call.1} parent=11 // pred_check_branch
          %348 = sbr.rel (%p346) target = $region52
        $region51: #{tpu_custom_call.1} parent=11 // pred_region
          _
        $region52: #{tpu_custom_call.1} parent=11 // pred_fallthru
          _
      $region12: #{tpu_custom_call.1} parent=5 // pred_fallthru
        _
      %p349 = scmp.lt.s32.totalorder %s22, 2
      // Predicated region
      $region53: #{tpu_custom_call.1} parent=5 // pred_check
        %p350 = pneg %p349
      $region54: #{tpu_custom_call.1} parent=5 // pred_check_branch
        %352 = sbr.rel (%p350) target = $region56
      $region55: #{tpu_custom_call.1} parent=5 // pred_region
        // Predicated region
        $region57: #{tpu_custom_call.1} parent=55 // pred_check
          %p353 = pneg %p42
        $region58: #{tpu_custom_call.1} parent=55 // pred_check_branch
          %355 = sbr.rel (%p353) target = $region60
        $region59: #{tpu_custom_call.1} parent=55 // pred_region
          %s356 = smul.u32 2, %s22
          %p357 = scmp.lt.s32.totalorder %s356, 3
          %s358 = scalar_select %p357, %s356, 3
          %s359 = smul.addr %s358, 8
          %s360 = scalar_lea.vmem %s0, %s359
          %s361 = smul.u32 2, %s22
        $region60: #{tpu_custom_call.1} parent=55 // pred_fallthru
          _
      $region56: #{tpu_custom_call.1} parent=5 // pred_fallthru
        _
      %p362 = scmp.le.s32.totalorder 1, %s22
      %p363 = scmp.lt.s32.totalorder %s22, 3
      %p364 = pnand %p362, %p363
      %p365 = pneg %p364
      // Predicated region
      $region61: #{tpu_custom_call.1} parent=5 // pred_check
        _
      $region62: #{tpu_custom_call.1} parent=5 // pred_check_branch
        %367 = sbr.rel (%p364) target = $region64
      $region63: #{tpu_custom_call.1} parent=5 // pred_region
        %s368 = ssub.s32 %s22, 1
        // Predicated region
        $region65: #{tpu_custom_call.1} parent=63 // pred_check
          %p369 = pneg %p90
        $region66: #{tpu_custom_call.1} parent=63 // pred_check_branch
          %371 = sbr.rel (%p369) target = $region68
        $region67: #{tpu_custom_call.1} parent=63 // pred_region
          %373 = dma.done [#allocation3], 16
        $region68: #{tpu_custom_call.1} parent=63 // pred_fallthru
          _
        // Predicated region
        $region69: #{tpu_custom_call.1} parent=63 // pred_check
          %p374 = pneg %p195
        $region70: #{tpu_custom_call.1} parent=63 // pred_check_branch
          %376 = sbr.rel (%p374) target = $region72
        $region71: #{tpu_custom_call.1} parent=63 // pred_region
          %378 = dma.done [#allocation6], 1024
        $region72: #{tpu_custom_call.1} parent=63 // pred_fallthru
          _
        %s379 = smul.u32 2, %s27
        %p380 = scmp.lt.s32.totalorder %s379, 3
        %s381 = scalar_select %p380, %s379, 3
        %s382 = smul.addr %s381, 8
        %s383 = scalar_lea.vmem %s0, %s382
        %p384 = pneg %p48
        %p385 = pneg %p45
        %p386 = pneg %p69
        %p387 = pneg %p66
        %p388 = pneg %p90
        %p389 = pneg %p87
        %p390 = pneg %p111
        %p391 = pneg %p108
        %p392 = pneg %p132
        %p393 = pneg %p129
        %p394 = pneg %p153
        %p395 = pneg %p150
        %p396 = pneg %p174
        %p397 = pneg %p171
        %p398 = pneg %p195
        %p399 = pneg %p192
        %p400 = pneg %p216
        %p401 = pneg %p213
        %p402 = pneg %p237
        %p403 = pneg %p234
        %p404 = pneg %p258
        %p405 = pneg %p255
        %p406 = pneg %p284
        %p407 = pneg %p281
        %s408 = sand.u32 %s271, 1
        %s409 = scalar_lea.sflag [#allocation4], %s408
        %s410 = sand.u32 %s271, 1
        %s411 = smul.addr %s410, 16
        %s412 = scalar_lea.vmem [#allocation7], %s411
        %s413 = smul.u32 2, %s27
        %p414 = scmp.lt.s32.totalorder %s413, 3
        %s415 = scalar_select %p414, %s413, 3
        %s416 = smul.addr %s415, 8
        %s417 = scalar_lea.vmem %s0, %s416
        %s418 = smul.u32 2, %s27
        %s419 = smul.u32 2, %s27
        %v420 = vld [vmem:[%s417] sm:$0xff]
        %v421 = vld [vmem:[%s417 + $0x8] sm:$0xff]
        %v422 = vld [vmem:[%s1] sm:$0xff]
        %v423 = vld [vmem:[%s1 + $0x8] sm:$0xff]
        %v424 = vld [vmem:[%s1 + $0x10] sm:$0xff]
        %v425 = vld [vmem:[%s1 + $0x18] sm:$0xff]
        %v426 = vld [vmem:[%s1 + $0x20] sm:$0xff]
        %v427 = vld [vmem:[%s1 + $0x28] sm:$0xff]
        %v428 = vld [vmem:[%s1 + $0x30] sm:$0xff]
        %v429 = vld [vmem:[%s1 + $0x38] sm:$0xff]
        %v430 = vld [vmem:[%s1 + $0x40] sm:$0xff]
        %v431 = vld [vmem:[%s1 + $0x48] sm:$0xff]
        %v432 = vld [vmem:[%s1 + $0x50] sm:$0xff]
        %v433 = vld [vmem:[%s1 + $0x58] sm:$0xff]
        %v434 = vld [vmem:[%s1 + $0x60] sm:$0xff]
        %v435 = vld [vmem:[%s1 + $0x68] sm:$0xff]
        %v436 = vld [vmem:[%s1 + $0x70] sm:$0xff]
        %v437 = vld [vmem:[%s1 + $0x78] sm:$0xff]
        %v438 = vld [vmem:[#allocation2] sm:$0x1]
        %v440 = vperm.slane %v438, 0
        %442 = vmatpush.msra.mxu0 %v437
        %443 = vmatpush.msra.mxu0 %v436
        %444 = vmatpush.msra.mxu0 %v435
        %445 = vmatpush.msra.mxu0 %v434
        %446 = vmatpush.msra.mxu0 %v433
        %447 = vmatpush.msra.mxu0 %v432
        %448 = vmatpush.msra.mxu0 %v431
        %449 = vmatpush.msra.mxu0 %v430
        %450 = vmatpush.msra.mxu0 %v429
        %451 = vmatpush.msra.mxu0 %v428
        %452 = vmatpush.msra.mxu0 %v427
        %453 = vmatpush.msra.mxu0 %v426
        %454 = vmatpush.msra.mxu0 %v425
        %455 = vmatpush.msra.mxu0 %v424
        %456 = vmatpush.msra.mxu0 %v423
        %457 = vmatpush.msra.mxu0 %v422
        %458 = vmatmul.f32.gmra.mxu0 %v420
        %v459 = vpop.f32.mrf.mxu0
        %v460 = vadd.f32 %v440, %v459
        %461 = vmatmul.f32.gmra.mxu0 %v421
        %v462 = vpop.f32.mrf.mxu0
        %v463 = vadd.f32 %v440, %v462
        %464 = vdwg.mxu0
        %v465 = vmul.f32 %v460, 0.5
        %v466 = vmul.f32 %v463, 0.5
        %v467 = vmul.f32 %v460, 0.70710677
        %v468 = vmul.f32 %v463, 0.70710677
        %v469 = vmul.f32 %v467, %v467
        %v470 = vmin.f32 16.0, %v469
        %v471 = vmul.f32 %v470, 2.1237322e-06
        %v472 = vadd.f32 %v471, 0.00028619796
        %v473 = vmul.f32 %v470, %v472
        %v474 = vadd.f32 %v473, 0.0036580483
        %v475 = vmul.f32 %v470, %v474
        %v476 = vadd.f32 %v475, 0.05243302
        %v477 = vmul.f32 %v470, %v476
        %v478 = vadd.f32 %v477, 0.18741608
        %v479 = vmul.f32 %v470, %v478
        %v480 = vadd.f32 %v479, 1.1283791
        %v481 = vmul.f32 %v467, %v480
        %v482 = vmul.f32 %v470, 3.8918573e-05
        %v483 = vadd.f32 %v482, 0.001143296
        %v484 = vmul.f32 %v470, %v483
        %v485 = vadd.f32 %v484, 0.014752088
        %v486 = vmul.f32 %v470, %v485
        %v487 = vadd.f32 %v486, 0.112945676
        %v488 = vmul.f32 %v470, %v487
        %v489 = vadd.f32 %v488, 0.4994258
        %v490 = vmul.f32 %v470, %v489
        %v491 = vadd.f32 %v490, 1.0
        %v492 = vrcp.pop %v491
        %v493 = vmul.f32 %v491, %v492
        %v494 = vsub.f32 1.0, %v493
        %v495 = vmul.f32 %v492, %v494
        %v496 = vadd.f32 %v492, %v495
        %vm497 = vweird.f32 %v491
        %vm498 = vweird.f32 %v492
        %vm499 = vmor %vm497, %vm498
        %v500 = vsel %vm499, %v492, %v496
        %v501 = vand.u32 2147483647, %v491
        %vm502 = vcmp.eq.f32.partialorder %v501, 8.507059e+37
        %v503 = vand.u32 %v491, 2147483648
        %v504 = vor.u32 1.1754944e-38, %v503
        %v505 = vsel %vm502, %v504, %v500
        %v506 = vmul.f32 %v481, %v505
        %v507 = vmin.f32 %v506, 1.0
        %v508 = vmax.f32 %v507, -1.0
        %v509 = vmul.f32 %v468, %v468
        %v510 = vmin.f32 16.0, %v509
        %v511 = vmul.f32 %v510, 2.1237322e-06
        %v512 = vadd.f32 %v511, 0.00028619796
        %v513 = vmul.f32 %v510, %v512
        %v514 = vadd.f32 %v513, 0.0036580483
        %v515 = vmul.f32 %v510, %v514
        %v516 = vadd.f32 %v515, 0.05243302
        %v517 = vmul.f32 %v510, %v516
        %v518 = vadd.f32 %v517, 0.18741608
        %v519 = vmul.f32 %v510, %v518
        %v520 = vadd.f32 %v519, 1.1283791
        %v521 = vmul.f32 %v468, %v520
        %v522 = vmul.f32 %v510, 3.8918573e-05
        %v523 = vadd.f32 %v522, 0.001143296
        %v524 = vmul.f32 %v510, %v523
        %v525 = vadd.f32 %v524, 0.014752088
        %v526 = vmul.f32 %v510, %v525
        %v527 = vadd.f32 %v526, 0.112945676
        %v528 = vmul.f32 %v510, %v527
        %v529 = vadd.f32 %v528, 0.4994258
        %v530 = vmul.f32 %v510, %v529
        %v531 = vadd.f32 %v530, 1.0
        %v532 = vrcp.pop %v531
        %v533 = vmul.f32 %v531, %v532
        %v534 = vsub.f32 1.0, %v533
        %v535 = vmul.f32 %v532, %v534
        %v536 = vadd.f32 %v532, %v535
        %vm537 = vweird.f32 %v531
        %vm538 = vweird.f32 %v532
        %vm539 = vmor %vm537, %vm538
        %v540 = vsel %vm539, %v532, %v536
        %v541 = vand.u32 2147483647, %v531
        %vm542 = vcmp.eq.f32.partialorder %v541, 8.507059e+37
        %v543 = vand.u32 %v531, 2147483648
        %v544 = vor.u32 1.1754944e-38, %v543
        %v545 = vsel %vm542, %v544, %v540
        %v546 = vmul.f32 %v521, %v545
        %v547 = vmin.f32 %v546, 1.0
        %v548 = vmax.f32 %v547, -1.0
        %v549 = vadd.f32 %v508, 1.0
        %v550 = vadd.f32 %v548, 1.0
        %v551 = vmul.f32 %v465, %v549
        %v552 = vmul.f32 %v466, %v550
        %v553 = vld [vmem:[%s3] sm:$0xff]
        %v554 = vld [vmem:[%s3 + $0x8] sm:$0xff]
        %v555 = vld [vmem:[%s3 + $0x10] sm:$0xff]
        %v556 = vld [vmem:[%s3 + $0x18] sm:$0xff]
        %v557 = vld [vmem:[%s3 + $0x20] sm:$0xff]
        %v558 = vld [vmem:[%s3 + $0x28] sm:$0xff]
        %v559 = vld [vmem:[%s3 + $0x30] sm:$0xff]
        %v560 = vld [vmem:[%s3 + $0x38] sm:$0xff]
        %v561 = vld [vmem:[%s3 + $0x40] sm:$0xff]
        %v562 = vld [vmem:[%s3 + $0x48] sm:$0xff]
        %v563 = vld [vmem:[%s3 + $0x50] sm:$0xff]
        %v564 = vld [vmem:[%s3 + $0x58] sm:$0xff]
        %v565 = vld [vmem:[%s3 + $0x60] sm:$0xff]
        %v566 = vld [vmem:[%s3 + $0x68] sm:$0xff]
        %v567 = vld [vmem:[%s3 + $0x70] sm:$0xff]
        %v568 = vld [vmem:[%s3 + $0x78] sm:$0xff]
        %v569 = vld [vmem:[%s4] sm:$0x1]
        %v571 = vperm.slane %v569, 0
        %573 = vmatpush.msra.mxu0 %v568
        %574 = vmatpush.msra.mxu0 %v567
        %575 = vmatpush.msra.mxu0 %v566
        %576 = vmatpush.msra.mxu0 %v565
        %577 = vmatpush.msra.mxu0 %v564
        %578 = vmatpush.msra.mxu0 %v563
        %579 = vmatpush.msra.mxu0 %v562
        %580 = vmatpush.msra.mxu0 %v561
        %581 = vmatpush.msra.mxu0 %v560
        %582 = vmatpush.msra.mxu0 %v559
        %583 = vmatpush.msra.mxu0 %v558
        %584 = vmatpush.msra.mxu0 %v557
        %585 = vmatpush.msra.mxu0 %v556
        %586 = vmatpush.msra.mxu0 %v555
        %587 = vmatpush.msra.mxu0 %v554
        %588 = vmatpush.msra.mxu0 %v553
        %589 = vmatmul.f32.gmra.mxu0 %v551
        %v590 = vpop.f32.mrf.mxu0
        %v591 = vadd.f32 %v571, %v590
        %592 = vmatmul.f32.gmra.mxu0 %v552
        %v593 = vpop.f32.mrf.mxu0
        %v594 = vadd.f32 %v571, %v593
        %595 = vdwg.mxu0
        %v596 = vmul.f32 %v591, 0.5
        %v597 = vmul.f32 %v594, 0.5
        %v598 = vmul.f32 %v591, 0.70710677
        %v599 = vmul.f32 %v594, 0.70710677
        %v600 = vmul.f32 %v598, %v598
        %v601 = vmin.f32 16.0, %v600
        %v602 = vmul.f32 %v601, 2.1237322e-06
        %v603 = vadd.f32 %v602, 0.00028619796
        %v604 = vmul.f32 %v601, %v603
        %v605 = vadd.f32 %v604, 0.0036580483
        %v606 = vmul.f32 %v601, %v605
        %v607 = vadd.f32 %v606, 0.05243302
        %v608 = vmul.f32 %v601, %v607
        %v609 = vadd.f32 %v608, 0.18741608
        %v610 = vmul.f32 %v601, %v609
        %v611 = vadd.f32 %v610, 1.1283791
        %v612 = vmul.f32 %v598, %v611
        %v613 = vmul.f32 %v601, 3.8918573e-05
        %v614 = vadd.f32 %v613, 0.001143296
        %v615 = vmul.f32 %v601, %v614
        %v616 = vadd.f32 %v615, 0.014752088
        %v617 = vmul.f32 %v601, %v616
        %v618 = vadd.f32 %v617, 0.112945676
        %v619 = vmul.f32 %v601, %v618
        %v620 = vadd.f32 %v619, 0.4994258
        %v621 = vmul.f32 %v601, %v620
        %v622 = vadd.f32 %v621, 1.0
        %v623 = vrcp.pop %v622
        %v624 = vmul.f32 %v622, %v623
        %v625 = vsub.f32 1.0, %v624
        %v626 = vmul.f32 %v623, %v625
        %v627 = vadd.f32 %v623, %v626
        %vm628 = vweird.f32 %v622
        %vm629 = vweird.f32 %v623
        %vm630 = vmor %vm628, %vm629
        %v631 = vsel %vm630, %v623, %v627
        %v632 = vand.u32 2147483647, %v622
        %vm633 = vcmp.eq.f32.partialorder %v632, 8.507059e+37
        %v634 = vand.u32 %v622, 2147483648
        %v635 = vor.u32 1.1754944e-38, %v634
        %v636 = vsel %vm633, %v635, %v631
        %v637 = vmul.f32 %v612, %v636
        %v638 = vmin.f32 %v637, 1.0
        %v639 = vmax.f32 %v638, -1.0
        %v640 = vmul.f32 %v599, %v599
        %v641 = vmin.f32 16.0, %v640
        %v642 = vmul.f32 %v641, 2.1237322e-06
        %v643 = vadd.f32 %v642, 0.00028619796
        %v644 = vmul.f32 %v641, %v643
        %v645 = vadd.f32 %v644, 0.0036580483
        %v646 = vmul.f32 %v641, %v645
        %v647 = vadd.f32 %v646, 0.05243302
        %v648 = vmul.f32 %v641, %v647
        %v649 = vadd.f32 %v648, 0.18741608
        %v650 = vmul.f32 %v641, %v649
        %v651 = vadd.f32 %v650, 1.1283791
        %v652 = vmul.f32 %v599, %v651
        %v653 = vmul.f32 %v641, 3.8918573e-05
        %v654 = vadd.f32 %v653, 0.001143296
        %v655 = vmul.f32 %v641, %v654
        %v656 = vadd.f32 %v655, 0.014752088
        %v657 = vmul.f32 %v641, %v656
        %v658 = vadd.f32 %v657, 0.112945676
        %v659 = vmul.f32 %v641, %v658
        %v660 = vadd.f32 %v659, 0.4994258
        %v661 = vmul.f32 %v641, %v660
        %v662 = vadd.f32 %v661, 1.0
        %v663 = vrcp.pop %v662
        %v664 = vmul.f32 %v662, %v663
        %v665 = vsub.f32 1.0, %v664
        %v666 = vmul.f32 %v663, %v665
        %v667 = vadd.f32 %v663, %v666
        %vm668 = vweird.f32 %v662
        %vm669 = vweird.f32 %v663
        %vm670 = vmor %vm668, %vm669
        %v671 = vsel %vm670, %v663, %v667
        %v672 = vand.u32 2147483647, %v662
        %vm673 = vcmp.eq.f32.partialorder %v672, 8.507059e+37
        %v674 = vand.u32 %v662, 2147483648
        %v675 = vor.u32 1.1754944e-38, %v674
        %v676 = vsel %vm673, %v675, %v671
        %v677 = vmul.f32 %v652, %v676
        %v678 = vmin.f32 %v677, 1.0
        %v679 = vmax.f32 %v678, -1.0
        %v680 = vadd.f32 %v639, 1.0
        %v681 = vadd.f32 %v679, 1.0
        %v682 = vmul.f32 %v596, %v680
        %v683 = vmul.f32 %v597, %v681
        %v684 = vld [vmem:[%s5] sm:$0xff]
        %v685 = vld [vmem:[%s5 + $0x8] sm:$0xff]
        %v686 = vld [vmem:[%s5 + $0x10] sm:$0xff]
        %v687 = vld [vmem:[%s5 + $0x18] sm:$0xff]
        %v688 = vld [vmem:[%s5 + $0x20] sm:$0xff]
        %v689 = vld [vmem:[%s5 + $0x28] sm:$0xff]
        %v690 = vld [vmem:[%s5 + $0x30] sm:$0xff]
        %v691 = vld [vmem:[%s5 + $0x38] sm:$0xff]
        %v692 = vld [vmem:[%s5 + $0x40] sm:$0xff]
        %v693 = vld [vmem:[%s5 + $0x48] sm:$0xff]
        %v694 = vld [vmem:[%s5 + $0x50] sm:$0xff]
        %v695 = vld [vmem:[%s5 + $0x58] sm:$0xff]
        %v696 = vld [vmem:[%s5 + $0x60] sm:$0xff]
        %v697 = vld [vmem:[%s5 + $0x68] sm:$0xff]
        %v698 = vld [vmem:[%s5 + $0x70] sm:$0xff]
        %v699 = vld [vmem:[%s5 + $0x78] sm:$0xff]
        %v700 = vld [vmem:[%s6] sm:$0x1]
        %v702 = vperm.slane %v700, 0
        %704 = vmatpush.msra.mxu0 %v699
        %705 = vmatpush.msra.mxu0 %v698
        %706 = vmatpush.msra.mxu0 %v697
        %707 = vmatpush.msra.mxu0 %v696
        %708 = vmatpush.msra.mxu0 %v695
        %709 = vmatpush.msra.mxu0 %v694
        %710 = vmatpush.msra.mxu0 %v693
        %711 = vmatpush.msra.mxu0 %v692
        %712 = vmatpush.msra.mxu0 %v691
        %713 = vmatpush.msra.mxu0 %v690
        %714 = vmatpush.msra.mxu0 %v689
        %715 = vmatpush.msra.mxu0 %v688
        %716 = vmatpush.msra.mxu0 %v687
        %717 = vmatpush.msra.mxu0 %v686
        %718 = vmatpush.msra.mxu0 %v685
        %719 = vmatpush.msra.mxu0 %v684
        %720 = vmatmul.f32.gmra.mxu0 %v682
        %v721 = vpop.f32.mrf.mxu0
        %v722 = vadd.f32 %v702, %v721
        %723 = vmatmul.f32.gmra.mxu0 %v683
        %v724 = vpop.f32.mrf.mxu0
        %v725 = vadd.f32 %v702, %v724
        %726 = vdwg.mxu0
        %v727 = vmul.f32 %v722, 0.5
        %v728 = vmul.f32 %v725, 0.5
        %v729 = vmul.f32 %v722, 0.70710677
        %v730 = vmul.f32 %v725, 0.70710677
        %v731 = vmul.f32 %v729, %v729
        %v732 = vmin.f32 16.0, %v731
        %v733 = vmul.f32 %v732, 2.1237322e-06
        %v734 = vadd.f32 %v733, 0.00028619796
        %v735 = vmul.f32 %v732, %v734
        %v736 = vadd.f32 %v735, 0.0036580483
        %v737 = vmul.f32 %v732, %v736
        %v738 = vadd.f32 %v737, 0.05243302
        %v739 = vmul.f32 %v732, %v738
        %v740 = vadd.f32 %v739, 0.18741608
        %v741 = vmul.f32 %v732, %v740
        %v742 = vadd.f32 %v741, 1.1283791
        %v743 = vmul.f32 %v729, %v742
        %v744 = vmul.f32 %v732, 3.8918573e-05
        %v745 = vadd.f32 %v744, 0.001143296
        %v746 = vmul.f32 %v732, %v745
        %v747 = vadd.f32 %v746, 0.014752088
        %v748 = vmul.f32 %v732, %v747
        %v749 = vadd.f32 %v748, 0.112945676
        %v750 = vmul.f32 %v732, %v749
        %v751 = vadd.f32 %v750, 0.4994258
        %v752 = vmul.f32 %v732, %v751
        %v753 = vadd.f32 %v752, 1.0
        %v754 = vrcp.pop %v753
        %v755 = vmul.f32 %v753, %v754
        %v756 = vsub.f32 1.0, %v755
        %v757 = vmul.f32 %v754, %v756
        %v758 = vadd.f32 %v754, %v757
        %vm759 = vweird.f32 %v753
        %vm760 = vweird.f32 %v754
        %vm761 = vmor %vm759, %vm760
        %v762 = vsel %vm761, %v754, %v758
        %v763 = vand.u32 2147483647, %v753
        %vm764 = vcmp.eq.f32.partialorder %v763, 8.507059e+37
        %v765 = vand.u32 %v753, 2147483648
        %v766 = vor.u32 1.1754944e-38, %v765
        %v767 = vsel %vm764, %v766, %v762
        %v768 = vmul.f32 %v743, %v767
        %v769 = vmin.f32 %v768, 1.0
        %v770 = vmax.f32 %v769, -1.0
        %v771 = vmul.f32 %v730, %v730
        %v772 = vmin.f32 16.0, %v771
        %v773 = vmul.f32 %v772, 2.1237322e-06
        %v774 = vadd.f32 %v773, 0.00028619796
        %v775 = vmul.f32 %v772, %v774
        %v776 = vadd.f32 %v775, 0.0036580483
        %v777 = vmul.f32 %v772, %v776
        %v778 = vadd.f32 %v777, 0.05243302
        %v779 = vmul.f32 %v772, %v778
        %v780 = vadd.f32 %v779, 0.18741608
        %v781 = vmul.f32 %v772, %v780
        %v782 = vadd.f32 %v781, 1.1283791
        %v783 = vmul.f32 %v730, %v782
        %v784 = vmul.f32 %v772, 3.8918573e-05
        %v785 = vadd.f32 %v784, 0.001143296
        %v786 = vmul.f32 %v772, %v785
        %v787 = vadd.f32 %v786, 0.014752088
        %v788 = vmul.f32 %v772, %v787
        %v789 = vadd.f32 %v788, 0.112945676
        %v790 = vmul.f32 %v772, %v789
        %v791 = vadd.f32 %v790, 0.4994258
        %v792 = vmul.f32 %v772, %v791
        %v793 = vadd.f32 %v792, 1.0
        %v794 = vrcp.pop %v793
        %v795 = vmul.f32 %v793, %v794
        %v796 = vsub.f32 1.0, %v795
        %v797 = vmul.f32 %v794, %v796
        %v798 = vadd.f32 %v794, %v797
        %vm799 = vweird.f32 %v793
        %vm800 = vweird.f32 %v794
        %vm801 = vmor %vm799, %vm800
        %v802 = vsel %vm801, %v794, %v798
        %v803 = vand.u32 2147483647, %v793
        %vm804 = vcmp.eq.f32.partialorder %v803, 8.507059e+37
        %v805 = vand.u32 %v793, 2147483648
        %v806 = vor.u32 1.1754944e-38, %v805
        %v807 = vsel %vm804, %v806, %v802
        %v808 = vmul.f32 %v783, %v807
        %v809 = vmin.f32 %v808, 1.0
        %v810 = vmax.f32 %v809, -1.0
        %v811 = vadd.f32 %v770, 1.0
        %v812 = vadd.f32 %v810, 1.0
        %v813 = vmul.f32 %v727, %v811
        %v814 = vmul.f32 %v728, %v812
        %v815 = vld [vmem:[#allocation5] sm:$0xff]
        %v816 = vld [vmem:[#allocation5 + $0x8] sm:$0xff]
        %v817 = vld [vmem:[#allocation5 + $0x10] sm:$0xff]
        %v818 = vld [vmem:[#allocation5 + $0x18] sm:$0xff]
        %v819 = vld [vmem:[#allocation5 + $0x20] sm:$0xff]
        %v820 = vld [vmem:[#allocation5 + $0x28] sm:$0xff]
        %v821 = vld [vmem:[#allocation5 + $0x30] sm:$0xff]
        %v822 = vld [vmem:[#allocation5 + $0x38] sm:$0xff]
        %v823 = vld [vmem:[%s8] sm:$0x1]
        %v825 = vperm.slane %v823, 0
        %vm827 = vcmask 523264
        %v829 = vsel %vm827, %v813, 0
        %v832 = vsel %vm827, %v814, 0
        %834 = vmatpush.msra.mxu0 0.0
        %835 = vmatpush.msra.mxu0 0.0
        %836 = vmatpush.msra.mxu0 0.0
        %837 = vmatpush.msra.mxu0 0.0
        %838 = vmatpush.msra.mxu0 0.0
        %839 = vmatpush.msra.mxu0 0.0
        %840 = vmatpush.msra.mxu0 0.0
        %841 = vmatpush.msra.mxu0 0.0
        %842 = vmatpush.msra.mxu0 %v822
        %843 = vmatpush.msra.mxu0 %v821
        %844 = vmatpush.msra.mxu0 %v820
        %845 = vmatpush.msra.mxu0 %v819
        %846 = vmatpush.msra.mxu0 %v818
        %847 = vmatpush.msra.mxu0 %v817
        %848 = vmatpush.msra.mxu0 %v816
        %849 = vmatpush.msra.mxu0 %v815
        %850 = vmatmul.f32.gmra.mxu0 %v829
        %v851 = vpop.f32.mrf.mxu0
        %v852 = vadd.f32 %v825, %v851
        %853 = vmatmul.f32.gmra.mxu0 %v832
        %v854 = vpop.f32.mrf.mxu0
        %v855 = vadd.f32 %v825, %v854
        %856 = vdwg.mxu0
        %v857 = vmul.f32 %v852, 0.5
        %v858 = vmul.f32 %v855, 0.5
        %v859 = vmul.f32 %v852, 0.70710677
        %v860 = vmul.f32 %v855, 0.70710677
        %v861 = vmul.f32 %v859, %v859
        %v862 = vmin.f32 16.0, %v861
        %v863 = vmul.f32 %v862, 2.1237322e-06
        %v864 = vadd.f32 %v863, 0.00028619796
        %v865 = vmul.f32 %v862, %v864
        %v866 = vadd.f32 %v865, 0.0036580483
        %v867 = vmul.f32 %v862, %v866
        %v868 = vadd.f32 %v867, 0.05243302
        %v869 = vmul.f32 %v862, %v868
        %v870 = vadd.f32 %v869, 0.18741608
        %v871 = vmul.f32 %v862, %v870
        %v872 = vadd.f32 %v871, 1.1283791
        %v873 = vmul.f32 %v859, %v872
        %v874 = vmul.f32 %v862, 3.8918573e-05
        %v875 = vadd.f32 %v874, 0.001143296
        %v876 = vmul.f32 %v862, %v875
        %v877 = vadd.f32 %v876, 0.014752088
        %v878 = vmul.f32 %v862, %v877
        %v879 = vadd.f32 %v878, 0.112945676
        %v880 = vmul.f32 %v862, %v879
        %v881 = vadd.f32 %v880, 0.4994258
        %v882 = vmul.f32 %v862, %v881
        %v883 = vadd.f32 %v882, 1.0
        %v884 = vrcp.pop %v883
        %v885 = vmul.f32 %v883, %v884
        %v886 = vsub.f32 1.0, %v885
        %v887 = vmul.f32 %v884, %v886
        %v888 = vadd.f32 %v884, %v887
        %vm889 = vweird.f32 %v883
        %vm890 = vweird.f32 %v884
        %vm891 = vmor %vm889, %vm890
        %v892 = vsel %vm891, %v884, %v888
        %v893 = vand.u32 2147483647, %v883
        %vm894 = vcmp.eq.f32.partialorder %v893, 8.507059e+37
        %v895 = vand.u32 %v883, 2147483648
        %v896 = vor.u32 1.1754944e-38, %v895
        %v897 = vsel %vm894, %v896, %v892
        %v898 = vmul.f32 %v873, %v897
        %v899 = vmin.f32 %v898, 1.0
        %v900 = vmax.f32 %v899, -1.0
        %v901 = vmul.f32 %v860, %v860
        %v902 = vmin.f32 16.0, %v901
        %v903 = vmul.f32 %v902, 2.1237322e-06
        %v904 = vadd.f32 %v903, 0.00028619796
        %v905 = vmul.f32 %v902, %v904
        %v906 = vadd.f32 %v905, 0.0036580483
        %v907 = vmul.f32 %v902, %v906
        %v908 = vadd.f32 %v907, 0.05243302
        %v909 = vmul.f32 %v902, %v908
        %v910 = vadd.f32 %v909, 0.18741608
        %v911 = vmul.f32 %v902, %v910
        %v912 = vadd.f32 %v911, 1.1283791
        %v913 = vmul.f32 %v860, %v912
        %v914 = vmul.f32 %v902, 3.8918573e-05
        %v915 = vadd.f32 %v914, 0.001143296
        %v916 = vmul.f32 %v902, %v915
        %v917 = vadd.f32 %v916, 0.014752088
        %v918 = vmul.f32 %v902, %v917
        %v919 = vadd.f32 %v918, 0.112945676
        %v920 = vmul.f32 %v902, %v919
        %v921 = vadd.f32 %v920, 0.4994258
        %v922 = vmul.f32 %v902, %v921
        %v923 = vadd.f32 %v922, 1.0
        %v924 = vrcp.pop %v923
        %v925 = vmul.f32 %v923, %v924
        %v926 = vsub.f32 1.0, %v925
        %v927 = vmul.f32 %v924, %v926
        %v928 = vadd.f32 %v924, %v927
        %vm929 = vweird.f32 %v923
        %vm930 = vweird.f32 %v924
        %vm931 = vmor %vm929, %vm930
        %v932 = vsel %vm931, %v924, %v928
        %v933 = vand.u32 2147483647, %v923
        %vm934 = vcmp.eq.f32.partialorder %v933, 8.507059e+37
        %v935 = vand.u32 %v923, 2147483648
        %v936 = vor.u32 1.1754944e-38, %v935
        %v937 = vsel %vm934, %v936, %v932
        %v938 = vmul.f32 %v913, %v937
        %v939 = vmin.f32 %v938, 1.0
        %v940 = vmax.f32 %v939, -1.0
        %v941 = vadd.f32 %v900, 1.0
        %v942 = vadd.f32 %v940, 1.0
        %v943 = vmul.f32 %v857, %v941
        %v944 = vmul.f32 %v858, %v942
        %v945 = vld [vmem:[%s9] sm:$0xff]
        %v946 = vld [vmem:[%s9 + $0x8] sm:$0xff]
        %v947 = vld [vmem:[%s9 + $0x10] sm:$0xff]
        %v948 = vld [vmem:[%s9 + $0x18] sm:$0xff]
        %v949 = vld [vmem:[%s9 + $0x20] sm:$0xff]
        %v950 = vld [vmem:[%s9 + $0x28] sm:$0xff]
        %v951 = vld [vmem:[%s9 + $0x30] sm:$0xff]
        %v952 = vld [vmem:[%s9 + $0x38] sm:$0xff]
        %v953 = vld [vmem:[%s10] sm:$0x1]
        %v955 = vperm.slane %v953, 0
        %v958 = vsel %vm827, %v943, 0
        %v961 = vsel %vm827, %v944, 0
        %963 = vmatpush.msra.mxu0 0.0
        %964 = vmatpush.msra.mxu0 0.0
        %965 = vmatpush.msra.mxu0 0.0
        %966 = vmatpush.msra.mxu0 0.0
        %967 = vmatpush.msra.mxu0 0.0
        %968 = vmatpush.msra.mxu0 0.0
        %969 = vmatpush.msra.mxu0 0.0
        %970 = vmatpush.msra.mxu0 0.0
        %971 = vmatpush.msra.mxu0 %v952
        %972 = vmatpush.msra.mxu0 %v951
        %973 = vmatpush.msra.mxu0 %v950
        %974 = vmatpush.msra.mxu0 %v949
        %975 = vmatpush.msra.mxu0 %v948
        %976 = vmatpush.msra.mxu0 %v947
        %977 = vmatpush.msra.mxu0 %v946
        %978 = vmatpush.msra.mxu0 %v945
        %979 = vmatmul.f32.gmra.mxu0 %v958
        %v980 = vpop.f32.mrf.mxu0
        %v981 = vadd.f32 %v955, %v980
        %982 = vmatmul.f32.gmra.mxu0 %v961
        %v983 = vpop.f32.mrf.mxu0
        %v984 = vadd.f32 %v955, %v983
        %985 = vdwg.mxu0
        %vm986 = vcmask 261120
        %987 = vst.msk [vmem:[%s412] sm:$0xff] %vm986, %v981
        %988 = vst.msk [vmem:[%s412 + $0x8] sm:$0xff] %vm986, %v984
        %s989 = sand.u32 %s271, 1
        %s990 = scalar_lea.sflag [#allocation4], %s989
        %s991 = sand.u32 %s271, 1
        %s992 = smul.addr %s991, 16
        %s993 = scalar_lea.vmem [#allocation7], %s992
        // Predicated region
        $region73: #{tpu_custom_call.1} parent=63 // pred_check
          %p994 = pneg %p281
        $region74: #{tpu_custom_call.1} parent=63 // pred_check_branch
          %996 = sbr.rel (%p994) target = $region76
        $region75: #{tpu_custom_call.1} parent=63 // pred_region
          %s997 = smul.u32 2, %s27
          %999 = vsyncadd %s990, 0
          %s1000 = smul.addr %s997, 8
          %s1001 = scalar_lea.hbm %s11, %s1000
          %s1002 = sshll.u32 %s993, 4
          %s1003 = int_to_ptr.vmem [resolvable:$true] %s1002
          %s1004 = sshll.u32 %s1001, 4
          %s1005 = int_to_ptr.hbm [resolvable:$true] %s1004
          %1010 = dma.vmem_to_hbm [thread:$0]  %s1003, 256, %s1005, %s990, 128, 128, 8
        $region76: #{tpu_custom_call.1} parent=63 // pred_fallthru
          _
      $region64: #{tpu_custom_call.1} parent=5 // pred_fallthru
        _
      %p1011 = scmp.le.s32.totalorder 2, %s22
      // Predicated region
      $region77: #{tpu_custom_call.1} parent=5 // pred_check
        %p1012 = pneg %p1011
      $region78: #{tpu_custom_call.1} parent=5 // pred_check_branch
        %1014 = sbr.rel (%p1012) target = $region80
      $region79: #{tpu_custom_call.1} parent=5 // pred_region
        %s1015 = ssub.s32 %s22, 2
        // Predicated region
        $region81: #{tpu_custom_call.1} parent=79 // pred_check
          %p1016 = pneg %p287
        $region82: #{tpu_custom_call.1} parent=79 // pred_check_branch
          %1018 = sbr.rel (%p1016) target = $region84
        $region83: #{tpu_custom_call.1} parent=79 // pred_region
          %s1019 = sand.u32 %s272, 1
          %s1020 = scalar_lea.sflag [#allocation4], %s1019
          %s1021 = sand.u32 %s272, 1
          %s1022 = smul.addr %s1021, 16
          %s1023 = scalar_lea.vmem [#allocation7], %s1022
          %1025 = dma.done %s1020, 256
        $region84: #{tpu_custom_call.1} parent=79 // pred_fallthru
          _
      $region80: #{tpu_custom_call.1} parent=5 // pred_fallthru
        _
    $region6: #{tpu_custom_call.1} parent=1 // loop_footer
      %s26 = sadd.s32 1, %s22
    $region7: #{tpu_custom_call.1} parent=1 // loop_footer_branch
      %21 = sbr.rel target = $region3
    $region8: #{tpu_custom_call.1} parent=1 // loop_exit
      _
    %1026 = vsyncpa [#allocation3], 1
    %s1027 = scalar_lea.sflag [#allocation3], 1
    %1028 = vsyncpa %s1027, 1
    %1029 = vsyncpa [#allocation6], 1
    %1030 = vsyncpa [#allocation4], 1
    %s1031 = scalar_lea.sflag [#allocation4], 1
    %1032 = vsyncpa %s1031, 1

</llo_original>
